<compile_context>
chip_gen: v7x
topology: tpu7x:2x2x1
jax: 0.10.0
libtpu: 0.0.40
codegen_flags: <defaults>
</compile_context>

<pallas_src>
import jax
import jax.numpy as jnp
from jax.experimental import pallas as pl
from jax.experimental.pallas import tpu as pltpu


def _round_up(x, m):
    return ((x + m - 1) // m) * m


def _critic_kernel(x_ref, w1_ref, b1_ref, w2_ref, b2_ref, w3_ref, b3_ref, o_ref):
    hi = jax.lax.Precision.HIGHEST
    x = x_ref[...]                                                      # (TB, D)
    h1 = jnp.dot(x, w1_ref[...], precision=hi,
                 preferred_element_type=jnp.float32) + b1_ref[...]      # (TB, H)
    h1 = jnp.maximum(h1, 0.0)                                           # ReLU
    h2 = jnp.dot(h1, w2_ref[...], precision=hi,
                 preferred_element_type=jnp.float32) + b2_ref[...]      # (TB, H)
    h2 = jnp.maximum(h2, 0.0)                                           # ReLU
    # Final Linear(H->1) as VPU multiply + lane reduction (no padded MXU pass,
    # no (TB,128) intermediate): (TB,H)*(1,H) -> sum over H -> (TB,1).
    v = jnp.sum(h2 * w3_ref[...], axis=-1, keepdims=True) + b3_ref[...]
    o_ref[...] = v.astype(o_ref.dtype)                                  # (TB, 1)


def critic_forward(state, params, *, block_b=4096):
    """state: (B, D) float32. params: dict of w1,b1,w2,b2,w3,b3 ((in,out) layout)."""
    w1, b1 = params["w1"], params["b1"]
    w2, b2 = params["w2"], params["b2"]
    w3, b3 = params["w3"], params["b3"]

    B, D = state.shape
    H = w1.shape[1]
    w3_row = w3.reshape(1, H)  # (H,1) -> (1,H) row used by the lane reduction

    # Batch tile: multiple of 8 (sublane), at most block_b, and small enough
    # that there are >= 2 grid steps when B allows it (v7x megacore).
    if B < 8:
        tb = B  # block dim == full array dim is always legal
    else:
        tb = min(_round_up(block_b, 8), _round_up((B + 1) // 2, 8))
    n_blocks = pl.cdiv(B, tb)

    weight_bytes = 4 * (D * H + H + H * H + H + H + 1)
    cost = pl.CostEstimate(
        flops=2 * B * (D * H + H * H + H),
        transcendentals=0,
        bytes_accessed=B * (D + 1) * 4 + weight_bytes,
    )

    out = pl.pallas_call(
        _critic_kernel,
        out_shape=jax.ShapeDtypeStruct((B, 1), jnp.float32),
        grid=(n_blocks,),
        in_specs=[
            pl.BlockSpec((tb, D), lambda i: (i, 0)),   # x tile   (streamed; ragged tail masked)
            pl.BlockSpec((D, H), lambda i: (0, 0)),    # w1       (VMEM-resident)
            pl.BlockSpec((1, H), lambda i: (0, 0)),    # b1       (resident)
            pl.BlockSpec((H, H), lambda i: (0, 0)),    # w2       (resident)
            pl.BlockSpec((1, H), lambda i: (0, 0)),    # b2       (resident)
            pl.BlockSpec((1, H), lambda i: (0, 0)),    # w3 row   (resident)
            pl.BlockSpec((1, 1), lambda i: (0, 0)),    # b3       (resident)
        ],
        out_specs=pl.BlockSpec((tb, 1), lambda i: (i, 0)),
        compiler_params=pltpu.CompilerParams(
            dimension_semantics=("parallel",),          # 2-TC split on v7x
            vmem_limit_bytes=32 * 1024 * 1024,          # safe on v5e (16 MiB default) and v7x (64 MiB phys)
        ),
        cost_estimate=cost,
    )(state, w1, b1, w2, b2, w3_row, b3)
    return out


def init_params(key, input_dims, hidden_dim=64):
    """Deterministic synthetic init (shapes match nn.Linear layers, transposed)."""
    k1, k2, k3, k4, k5, k6 = jax.random.split(key, 6)
    s1 = 1.0 / jnp.sqrt(input_dims)
    s2 = 1.0 / jnp.sqrt(hidden_dim)
    return {
        "w1": jax.random.uniform(k1, (input_dims, hidden_dim), jnp.float32, -s1, s1),
        "b1": jax.random.uniform(k2, (1, hidden_dim), jnp.float32, -s1, s1),
        "w2": jax.random.uniform(k3, (hidden_dim, hidden_dim), jnp.float32, -s2, s2),
        "b2": jax.random.uniform(k4, (1, hidden_dim), jnp.float32, -s2, s2),
        "w3": jax.random.uniform(k5, (hidden_dim, 1), jnp.float32, -s2, s2),
        "b3": jax.random.uniform(k6, (1, 1), jnp.float32, -s2, s2),
    }


def critic_ref(state, p):
    """Pure-JAX reference for correctness check (f32, highest precision)."""
    hi = jax.lax.Precision.HIGHEST
    h1 = jnp.maximum(jnp.dot(state, p["w1"], precision=hi) + p["b1"], 0.0)
    h2 = jnp.maximum(jnp.dot(h1, p["w2"], precision=hi) + p["b2"], 0.0)
    return jnp.dot(h2, p["w3"], precision=hi) + p["b3"]


if __name__ == "__main__":
    key = jax.random.PRNGKey(0)
    k_param, k_state1, k_state2 = jax.random.split(key, 3)

    B, D, H = 8, 32, 64
    params = init_params(k_param, D, H)

    # Small batch (single tile).
    state = jax.random.normal(k_state1, (B, D), jnp.float32)
    out = jax.block_until_ready(critic_forward(state, params))
    ref = critic_ref(state, params)
    assert out.shape == (B, 1), out.shape
    assert jnp.allclose(out, ref, atol=1e-4, rtol=1e-4), "mismatch vs reference (B=8)"

    # Multi-tile batch with a ragged tail (exercises the grid split for the
    # 2-step minimum and the masked boundary DMA of the partial tail tile).
    B2 = 300
    state2 = jax.random.normal(k_state2, (B2, D), jnp.float32)
    out2 = jax.block_until_ready(critic_forward(state2, params))
    ref2 = critic_ref(state2, params)
    assert out2.shape == (B2, 1), out2.shape
    assert jnp.allclose(out2, ref2, atol=1e-4, rtol=1e-4), "mismatch vs reference (B=300)"

    print("KERNEL_OK")
</pallas_src>

<mosaic_0001>
module attributes {stable_mosaic.version = 11 : i64} {
  func.func @_critic_kernel(%arg0: i32, %arg1: memref<8x32xf32, #tpu.memory_space<vmem>>, %arg2: memref<32x64xf32, #tpu.memory_space<vmem>>, %arg3: memref<1x64xf32, #tpu.memory_space<vmem>>, %arg4: memref<64x64xf32, #tpu.memory_space<vmem>>, %arg5: memref<1x64xf32, #tpu.memory_space<vmem>>, %arg6: memref<1x64xf32, #tpu.memory_space<vmem>>, %arg7: memref<1x1xf32, #tpu.memory_space<vmem>>, %arg8: memref<8x1xf32, #tpu.memory_space<vmem>>) attributes {dimension_semantics = [#tpu.dimension_semantics<parallel>], iteration_bounds = array<i64: 1>, scalar_prefetch = 0 : i64, scratch_operands = 0 : i64, tpu.core_type = #tpu.core_type<tc>, window_params = [{transform_indices = @transform_0, window_bounds = array<i64: 8, 32>}, {pipeline_mode = #tpu.pipeline_mode<synchronous>, transform_indices = @transform_1, window_bounds = array<i64: 32, 64>}, {pipeline_mode = #tpu.pipeline_mode<synchronous>, transform_indices = @transform_2, window_bounds = array<i64: 1, 64>}, {pipeline_mode = #tpu.pipeline_mode<synchronous>, transform_indices = @transform_3, window_bounds = array<i64: 64, 64>}, {pipeline_mode = #tpu.pipeline_mode<synchronous>, transform_indices = @transform_4, window_bounds = array<i64: 1, 64>}, {pipeline_mode = #tpu.pipeline_mode<synchronous>, transform_indices = @transform_5, window_bounds = array<i64: 1, 64>}, {pipeline_mode = #tpu.pipeline_mode<synchronous>, transform_indices = @transform_6, window_bounds = array<i64: 1, 1>}, {transform_indices = @transform_7, window_bounds = array<i64: 8, 1>}]} {
    %c0 = arith.constant 0 : index
    %c0_0 = arith.constant 0 : index
    %0 = vector.load %arg1[%c0, %c0_0] : memref<8x32xf32, #tpu.memory_space<vmem>>, vector<8x32xf32>
    %c0_1 = arith.constant 0 : index
    %c0_2 = arith.constant 0 : index
    %1 = vector.load %arg2[%c0_1, %c0_2] : memref<32x64xf32, #tpu.memory_space<vmem>>, vector<32x64xf32>
    %cst = arith.constant dense<0.000000e+00> : vector<8x64xf32>
    %2 = tpu.matmul %0, %1, %cst {dimension_numbers = #tpu.dot_dimension_numbers<[1], [0], [0], [1], [0, 0, 1, 1], [], []>, precision = #tpu.contract_precision<fp32>} : vector<8x32xf32>, vector<32x64xf32>, vector<8x64xf32> -> vector<8x64xf32>
    %c0_3 = arith.constant 0 : index
    %c0_4 = arith.constant 0 : index
    %3 = vector.load %arg3[%c0_3, %c0_4] : memref<1x64xf32, #tpu.memory_space<vmem>>, vector<1x64xf32>
    %4 = vector.broadcast %3 : vector<1x64xf32> to vector<8x64xf32>
    %5 = arith.addf %2, %4 : vector<8x64xf32>
    %cst_5 = arith.constant 0.000000e+00 : f32
    %6 = vector.broadcast %cst_5 : f32 to vector<8x64xf32>
    %7 = arith.maximumf %5, %6 : vector<8x64xf32>
    %c0_6 = arith.constant 0 : index
    %c0_7 = arith.constant 0 : index
    %8 = vector.load %arg4[%c0_6, %c0_7] : memref<64x64xf32, #tpu.memory_space<vmem>>, vector<64x64xf32>
    %cst_8 = arith.constant dense<0.000000e+00> : vector<8x64xf32>
    %9 = tpu.matmul %7, %8, %cst_8 {dimension_numbers = #tpu.dot_dimension_numbers<[1], [0], [0], [1], [0, 0, 1, 1], [], []>, precision = #tpu.contract_precision<fp32>} : vector<8x64xf32>, vector<64x64xf32>, vector<8x64xf32> -> vector<8x64xf32>
    %c0_9 = arith.constant 0 : index
    %c0_10 = arith.constant 0 : index
    %10 = vector.load %arg5[%c0_9, %c0_10] : memref<1x64xf32, #tpu.memory_space<vmem>>, vector<1x64xf32>
    %11 = vector.broadcast %10 : vector<1x64xf32> to vector<8x64xf32>
    %12 = arith.addf %9, %11 : vector<8x64xf32>
    %cst_11 = arith.constant 0.000000e+00 : f32
    %13 = vector.broadcast %cst_11 : f32 to vector<8x64xf32>
    %14 = arith.maximumf %12, %13 : vector<8x64xf32>
    %c0_12 = arith.constant 0 : index
    %c0_13 = arith.constant 0 : index
    %15 = vector.load %arg6[%c0_12, %c0_13] : memref<1x64xf32, #tpu.memory_space<vmem>>, vector<1x64xf32>
    %16 = vector.broadcast %15 : vector<1x64xf32> to vector<8x64xf32>
    %17 = arith.mulf %14, %16 : vector<8x64xf32>
    %cst_14 = arith.constant dense<0.000000e+00> : vector<8xf32>
    %18 = vector.multi_reduction <add>, %17, %cst_14 [1] : vector<8x64xf32> to vector<8xf32>
    %19 = vector.shape_cast %18 : vector<8xf32> to vector<8x1xf32>
    %c0_15 = arith.constant 0 : index
    %c0_16 = arith.constant 0 : index
    %20 = vector.load %arg7[%c0_15, %c0_16] : memref<1x1xf32, #tpu.memory_space<vmem>>, vector<1x1xf32>
    %21 = vector.broadcast %20 : vector<1x1xf32> to vector<8x1xf32>
    %22 = arith.addf %19, %21 : vector<8x1xf32>
    %c0_17 = arith.constant 0 : index
    %c0_18 = arith.constant 0 : index
    %23 = vector.load %arg8[%c0_17, %c0_18] : memref<8x1xf32, #tpu.memory_space<vmem>>, vector<8x1xf32>
    tpu.vector_store %arg8[%c0_17, %c0_18], %22 {strides = array<i32>} : memref<8x1xf32, #tpu.memory_space<vmem>>, vector<8x1xf32>,
    return
  }
  func.func @transform_0(%arg0: i32) -> (i32, i32) {
    %c0_i32 = arith.constant 0 : i32
    %c0_i32_0 = arith.constant 0 : i32
    return %arg0, %c0_i32 : i32, i32
  }
  func.func @transform_1(%arg0: i32) -> (i32, i32) {
    %c0_i32 = arith.constant 0 : i32
    %c0_i32_0 = arith.constant 0 : i32
    %c0_i32_1 = arith.constant 0 : i32
    return %c0_i32, %c0_i32_0 : i32, i32
  }
  func.func @transform_2(%arg0: i32) -> (i32, i32) {
    %c0_i32 = arith.constant 0 : i32
    %c0_i32_0 = arith.constant 0 : i32
    %c0_i32_1 = arith.constant 0 : i32
    return %c0_i32, %c0_i32_0 : i32, i32
  }
  func.func @transform_3(%arg0: i32) -> (i32, i32) {
    %c0_i32 = arith.constant 0 : i32
    %c0_i32_0 = arith.constant 0 : i32
    %c0_i32_1 = arith.constant 0 : i32
    return %c0_i32, %c0_i32_0 : i32, i32
  }
  func.func @transform_4(%arg0: i32) -> (i32, i32) {
    %c0_i32 = arith.constant 0 : i32
    %c0_i32_0 = arith.constant 0 : i32
    %c0_i32_1 = arith.constant 0 : i32
    return %c0_i32, %c0_i32_0 : i32, i32
  }
  func.func @transform_5(%arg0: i32) -> (i32, i32) {
    %c0_i32 = arith.constant 0 : i32
    %c0_i32_0 = arith.constant 0 : i32
    %c0_i32_1 = arith.constant 0 : i32
    return %c0_i32, %c0_i32_0 : i32, i32
  }
  func.func @transform_6(%arg0: i32) -> (i32, i32) {
    %c0_i32 = arith.constant 0 : i32
    %c0_i32_0 = arith.constant 0 : i32
    %c0_i32_1 = arith.constant 0 : i32
    return %c0_i32, %c0_i32_0 : i32, i32
  }
  func.func @transform_7(%arg0: i32) -> (i32, i32) {
    %c0_i32 = arith.constant 0 : i32
    %c0_i32_0 = arith.constant 0 : i32
    return %arg0, %c0_i32 : i32, i32
  }
}

</mosaic_0001>

<llo_original>
// kernel: tpu_custom_call.1
$region0: #{tpu_custom_call.1}
  #allocation0 [shape = 'u32[]', space=smem, size = 0x4, offset = 0x4, fixed_abs, tag = 'smem constant byte address 0x4 - core index']
  #allocation1 [shape = 'u32[144,128]{1,0:T(1,128)}', space=vmem, size = 0x12000, scoped, tag = 'internal scratch']
  #allocation2 [shape = 'f32[1,1]{1,0:T(1,128)S(1)}', space=vmem, size = 0x200, scoped, tag = 'scoped memory for tpu_custom_call.1']
  %s0 = inlined_call_operand.hbm [shape: f32[8,32], index: 0, kind: input, shape index: {}]
  %s1 = inlined_call_operand.hbm [shape: f32[32,64], index: 1, kind: input, shape index: {}]
  %s2 = inlined_call_operand.vmem [shape: f32[1,64], index: 2, kind: input, shape index: {}]
  %s3 = inlined_call_operand.hbm [shape: f32[64,64], index: 3, kind: input, shape index: {}]
  %s4 = inlined_call_operand.vmem [shape: f32[1,64], index: 4, kind: input, shape index: {}]
  %s5 = inlined_call_operand.vmem [shape: f32[1,64], index: 5, kind: input, shape index: {}]
  %s6 = inlined_call_operand.<no memory space> [shape: f32[1,1], index: 6, kind: input, shape index: {}]
  %s7 = inlined_call_operand.vmem [shape: f32[8,1], index: 7, kind: output, shape index: {}]
  %s8 = sld [smem:[#allocation0]]
  $region50: #{tpu_custom_call.1} parent=0
    _
  %s10 = ssub.s32 1, %s8
  %s11 = scalar_select 0, %s10, %s8
  %v12 = vstv %s6
  %13 = vst [vmem:[#allocation2] sm:$0x1] %v12
  $region1: #{tpu_custom_call.1} parent=0
    #allocation3 [shape = 'u8[4096]{0}', space=vmem, size = 0x1000, scoped, tag = 'input window, operand 0, single buffered']
    #allocation4 [shape = 's32[1]{0}', space=sflag, size = 0x4, scoped, tag = 'scoped memory for tpu_custom_call.1']
    #allocation5 [shape = 'u8[16384]{0}', space=vmem, size = 0x4000, scoped, tag = 'input window, operand 1, single buffered']
    #allocation6 [shape = 's32[1]{0}', space=sflag, size = 0x4, scoped, tag = 'scoped memory for tpu_custom_call.1']
    #allocation7 [shape = 'u8[32768]{0}', space=vmem, size = 0x8000, scoped, tag = 'input window, operand 3, single buffered']
    %14 = vsyncpa [#allocation4], 0
    %15 = vsyncpa [#allocation6], 0
    // Predicated region
    $region2: #{tpu_custom_call.1} parent=1 // pred_check
      _
    $region3: #{tpu_custom_call.1} parent=1 // pred_check_branch
      %17 = sbr.rel (0) target = $region5
    $region4: #{tpu_custom_call.1} parent=1 // pred_region
      %s19 = ssub.s32 128, 128
      %20 = vsyncadd [#allocation4], %s19
      %s22 = sshll.u32 [#allocation3], 4
      %s23 = int_to_ptr.vmem [resolvable:$true] %s22
      %25 = dma.hbm_to_vmem [thread:$0]  %s0, 128, %s23, [#allocation4]
    $region5: #{tpu_custom_call.1} parent=1 // pred_fallthru
      _
    // Predicated region
    $region6: #{tpu_custom_call.1} parent=1 // pred_check
      _
    $region7: #{tpu_custom_call.1} parent=1 // pred_check_branch
      %27 = sbr.rel (0) target = $region9
    $region8: #{tpu_custom_call.1} parent=1 // pred_region
      %s29 = ssub.s32 512, 512
      %30 = vsyncadd [#allocation6], %s29
      %s31 = sshll.u32 [#allocation5], 4
      %s32 = int_to_ptr.vmem [resolvable:$true] %s31
      %37 = dma.hbm_to_vmem [thread:$0]  %s1, 512, %s32, [#allocation6], 128, 128, 8
    $region9: #{tpu_custom_call.1} parent=1 // pred_fallthru
      _
    // Predicated region
    $region10: #{tpu_custom_call.1} parent=1 // pred_check
      _
    $region11: #{tpu_custom_call.1} parent=1 // pred_check_branch
      %39 = sbr.rel (0) target = $region13
    $region12: #{tpu_custom_call.1} parent=1 // pred_region
      _
    $region13: #{tpu_custom_call.1} parent=1 // pred_fallthru
      _
    // Predicated region
    $region14: #{tpu_custom_call.1} parent=1 // pred_check
      _
    $region15: #{tpu_custom_call.1} parent=1 // pred_check_branch
      %41 = sbr.rel (0) target = $region17
    $region16: #{tpu_custom_call.1} parent=1 // pred_region
      %s43 = ssub.s32 1024, 1024
      %44 = vsyncadd [#allocation6], %s43
      %s45 = sshll.u32 [#allocation7], 4
      %s46 = int_to_ptr.vmem [resolvable:$true] %s45
      %51 = dma.hbm_to_vmem [thread:$0]  %s3, 1024, %s46, [#allocation6], 128, 128, 8
    $region17: #{tpu_custom_call.1} parent=1 // pred_fallthru
      _
    // Predicated region
    $region18: #{tpu_custom_call.1} parent=1 // pred_check
      _
    $region19: #{tpu_custom_call.1} parent=1 // pred_check_branch
      %53 = sbr.rel (0) target = $region21
    $region20: #{tpu_custom_call.1} parent=1 // pred_region
      _
    $region21: #{tpu_custom_call.1} parent=1 // pred_fallthru
      _
    // Predicated region
    $region22: #{tpu_custom_call.1} parent=1 // pred_check
      _
    $region23: #{tpu_custom_call.1} parent=1 // pred_check_branch
      %55 = sbr.rel (0) target = $region25
    $region24: #{tpu_custom_call.1} parent=1 // pred_region
      _
    $region25: #{tpu_custom_call.1} parent=1 // pred_fallthru
      _
    // Predicated region
    $region26: #{tpu_custom_call.1} parent=1 // pred_check
      _
    $region27: #{tpu_custom_call.1} parent=1 // pred_check_branch
      %57 = sbr.rel (0) target = $region29
    $region28: #{tpu_custom_call.1} parent=1 // pred_region
      _
    $region29: #{tpu_custom_call.1} parent=1 // pred_fallthru
      _
    // Predicated region
    $region30: #{tpu_custom_call.1} parent=1 // pred_check
      _
    $region31: #{tpu_custom_call.1} parent=1 // pred_check_branch
      %59 = sbr.rel (0) target = $region33
    $region32: #{tpu_custom_call.1} parent=1 // pred_region
      %60 = dma.done [#allocation4], 128
    $region33: #{tpu_custom_call.1} parent=1 // pred_fallthru
      _
    // Predicated region
    $region34: #{tpu_custom_call.1} parent=1 // pred_check
      _
    $region35: #{tpu_custom_call.1} parent=1 // pred_check_branch
      %62 = sbr.rel (0) target = $region37
    $region36: #{tpu_custom_call.1} parent=1 // pred_region
      %63 = dma.done [#allocation6], 512
    $region37: #{tpu_custom_call.1} parent=1 // pred_fallthru
      _
    // Predicated region
    $region38: #{tpu_custom_call.1} parent=1 // pred_check
      _
    $region39: #{tpu_custom_call.1} parent=1 // pred_check_branch
      %65 = sbr.rel (0) target = $region41
    $region40: #{tpu_custom_call.1} parent=1 // pred_region
      %66 = dma.done [#allocation6], 1024
    $region41: #{tpu_custom_call.1} parent=1 // pred_fallthru
      _
    %v67 = vld [vmem:[#allocation3] sm:$0xff]
    %v68 = vld [vmem:[#allocation5] sm:$0xff]
    %v69 = vld [vmem:[#allocation5 + $0x8] sm:$0xff]
    %v70 = vld [vmem:[#allocation5 + $0x10] sm:$0xff]
    %v71 = vld [vmem:[#allocation5 + $0x18] sm:$0xff]
    %v72 = vld [vmem:[%s2] sm:$0x1]
    %v74 = vlaneseq
    %v75 = vshrl.u32 %v74, 7
    %v76 = vsub.s32 0, %v75
    %v77 = vrot.slane %v72, %v76
    %vm79 = vcmask 261120
    %v81 = vsel %vm79, %v67, 0
    %83 = vmatprep.subr.mxu0 0.0
    %v84 = vand.u32 %v68, 4294901760
    %85 = vmatpush1.msra.mxu0 %v84
    %86 = vmatprep.subr.mxu0 0.0
    %v87 = vand.u32 %v69, 4294901760
    %88 = vmatpush1.msra.mxu0 %v87
    %89 = vmatprep.subr.mxu0 0.0
    %v90 = vand.u32 %v70, 4294901760
    %91 = vmatpush1.msra.mxu0 %v90
    %92 = vmatprep.subr.mxu0 0.0
    %v93 = vand.u32 %v71, 4294901760
    %94 = vmatpush1.msra.mxu0 %v93
    %95 = vmatprep.subr.mxu0 0.0
    %96 = vmatpush1.msra.mxu0 0.0
    %97 = vmatprep.subr.mxu0 0.0
    %98 = vmatpush1.msra.mxu0 0.0
    %99 = vmatprep.subr.mxu0 0.0
    %100 = vmatpush1.msra.mxu0 0.0
    %101 = vmatprep.subr.mxu0 0.0
    %102 = vmatpush1.msra.mxu0 0.0
    %103 = vmatprep.subr.mxu0 0.0
    %104 = vmatpush1.msra.mxu0 0.0
    %105 = vmatprep.subr.mxu0 0.0
    %106 = vmatpush1.msra.mxu0 0.0
    %107 = vmatprep.subr.mxu0 0.0
    %108 = vmatpush1.msra.mxu0 0.0
    %109 = vmatprep.subr.mxu0 0.0
    %110 = vmatpush1.msra.mxu0 0.0
    %111 = vmatprep.subr.mxu0 0.0
    %112 = vmatpush1.msra.mxu0 0.0
    %113 = vmatprep.subr.mxu0 0.0
    %114 = vmatpush1.msra.mxu0 0.0
    %115 = vmatprep.subr.mxu0 0.0
    %116 = vmatpush1.msra.mxu0 0.0
    %117 = vmatprep.subr.mxu0 0.0
    %118 = vmatpush1.msra.mxu0 0.0
    %119 = vmatprep.subr.mxu0 0.0
    %120 = vmatpush1.msra.mxu0 0.0
    %121 = vmatprep.subr.mxu0 0.0
    %122 = vmatpush1.msra.mxu0 0.0
    %123 = vmatprep.subr.mxu0 0.0
    %124 = vmatpush1.msra.mxu0 0.0
    %125 = vmatprep.subr.mxu0 0.0
    %126 = vmatpush1.msra.mxu0 0.0
    %127 = vmatprep.subr.mxu0 0.0
    %128 = vmatpush1.msra.mxu0 0.0
    %129 = vmatprep.subr.mxu0 0.0
    %130 = vmatpush1.msra.mxu0 0.0
    %131 = vmatprep.subr.mxu0 0.0
    %132 = vmatpush1.msra.mxu0 0.0
    %133 = vmatprep.subr.mxu0 0.0
    %134 = vmatpush1.msra.mxu0 0.0
    %135 = vmatprep.subr.mxu0 0.0
    %136 = vmatpush1.msra.mxu0 0.0
    %137 = vmatprep.subr.mxu0 0.0
    %138 = vmatpush1.msra.mxu0 0.0
    %139 = vmatprep.subr.mxu0 0.0
    %140 = vmatpush1.msra.mxu0 0.0
    %141 = vmatprep.subr.mxu0 0.0
    %142 = vmatpush1.msra.mxu0 0.0
    %143 = vmatprep.subr.mxu0 0.0
    %144 = vmatpush1.msra.mxu0 0.0
    %145 = vmatprep.subr.mxu0 0.0
    %146 = vmatpush1.msra.mxu0 0.0
    %147 = vmatprep.subr.mxu0 0.0
    %148 = vmatpush1.msra.mxu0 0.0
    %149 = vmatprep.subr.mxu0 0.0
    %150 = vmatpush1.msra.mxu0 0.0
    %151 = vmatprep.mubr.f32.mxu0 0.0
    %v152 = vand.u32 %v81, 4294901760
    %v153 = vsub.f32 %v81, %v152
    %v154 = vand.u32 %v153, 4294901760
    %v155 = vsub.f32 %v153, %v154
    %v156 = vand.u32 %v155, 4294901760
    %157 = vmatmul.mubr.f32.gmra.mrb[0].mxu0 %v156
    %v158 = vpop.f32.mrb[0].mxu0
    %v159 = vadd.f32 %v77, %v158
    %v160 = vpop.f32.mrb[0].mxu0
    %161 = vdwg.mxu0
    %162 = vmatprep.subr.mxu0 0.0
    %v163 = vand.u32 %v68, 4294901760
    %v164 = vsub.f32 %v68, %v163
    %v165 = vand.u32 %v164, 4294901760
    %v166 = vsub.f32 %v164, %v165
    %v167 = vand.u32 %v166, 4294901760
    %168 = vmatpush1.msra.mxu0 %v167
    %169 = vmatprep.subr.mxu0 0.0
    %v170 = vand.u32 %v69, 4294901760
    %v171 = vsub.f32 %v69, %v170
    %v172 = vand.u32 %v171, 4294901760
    %v173 = vsub.f32 %v171, %v172
    %v174 = vand.u32 %v173, 4294901760
    %175 = vmatpush1.msra.mxu0 %v174
    %176 = vmatprep.subr.mxu0 0.0
    %v177 = vand.u32 %v70, 4294901760
    %v178 = vsub.f32 %v70, %v177
    %v179 = vand.u32 %v178, 4294901760
    %v180 = vsub.f32 %v178, %v179
    %v181 = vand.u32 %v180, 4294901760
    %182 = vmatpush1.msra.mxu0 %v181
    %183 = vmatprep.subr.mxu0 0.0
    %v184 = vand.u32 %v71, 4294901760
    %v185 = vsub.f32 %v71, %v184
    %v186 = vand.u32 %v185, 4294901760
    %v187 = vsub.f32 %v185, %v186
    %v188 = vand.u32 %v187, 4294901760
    %189 = vmatpush1.msra.mxu0 %v188
    %190 = vmatprep.subr.mxu0 0.0
    %191 = vmatpush1.msra.mxu0 0.0
    %192 = vmatprep.subr.mxu0 0.0
    %193 = vmatpush1.msra.mxu0 0.0
    %194 = vmatprep.subr.mxu0 0.0
    %195 = vmatpush1.msra.mxu0 0.0
    %196 = vmatprep.subr.mxu0 0.0
    %197 = vmatpush1.msra.mxu0 0.0
    %198 = vmatprep.subr.mxu0 0.0
    %199 = vmatpush1.msra.mxu0 0.0
    %200 = vmatprep.subr.mxu0 0.0
    %201 = vmatpush1.msra.mxu0 0.0
    %202 = vmatprep.subr.mxu0 0.0
    %203 = vmatpush1.msra.mxu0 0.0
    %204 = vmatprep.subr.mxu0 0.0
    %205 = vmatpush1.msra.mxu0 0.0
    %206 = vmatprep.subr.mxu0 0.0
    %207 = vmatpush1.msra.mxu0 0.0
    %208 = vmatprep.subr.mxu0 0.0
    %209 = vmatpush1.msra.mxu0 0.0
    %210 = vmatprep.subr.mxu0 0.0
    %211 = vmatpush1.msra.mxu0 0.0
    %212 = vmatprep.subr.mxu0 0.0
    %213 = vmatpush1.msra.mxu0 0.0
    %214 = vmatprep.subr.mxu0 0.0
    %215 = vmatpush1.msra.mxu0 0.0
    %216 = vmatprep.subr.mxu0 0.0
    %217 = vmatpush1.msra.mxu0 0.0
    %218 = vmatprep.subr.mxu0 0.0
    %219 = vmatpush1.msra.mxu0 0.0
    %220 = vmatprep.subr.mxu0 0.0
    %221 = vmatpush1.msra.mxu0 0.0
    %222 = vmatprep.subr.mxu0 0.0
    %223 = vmatpush1.msra.mxu0 0.0
    %224 = vmatprep.subr.mxu0 0.0
    %225 = vmatpush1.msra.mxu0 0.0
    %226 = vmatprep.subr.mxu0 0.0
    %227 = vmatpush1.msra.mxu0 0.0
    %228 = vmatprep.subr.mxu0 0.0
    %229 = vmatpush1.msra.mxu0 0.0
    %230 = vmatprep.subr.mxu0 0.0
    %231 = vmatpush1.msra.mxu0 0.0
    %232 = vmatprep.subr.mxu0 0.0
    %233 = vmatpush1.msra.mxu0 0.0
    %234 = vmatprep.subr.mxu0 0.0
    %235 = vmatpush1.msra.mxu0 0.0
    %236 = vmatprep.subr.mxu0 0.0
    %237 = vmatpush1.msra.mxu0 0.0
    %238 = vmatprep.subr.mxu0 0.0
    %239 = vmatpush1.msra.mxu0 0.0
    %240 = vmatprep.subr.mxu0 0.0
    %241 = vmatpush1.msra.mxu0 0.0
    %242 = vmatprep.subr.mxu0 0.0
    %243 = vmatpush1.msra.mxu0 0.0
    %244 = vmatprep.subr.mxu0 0.0
    %245 = vmatpush1.msra.mxu0 0.0
    %246 = vmatprep.mubr.f32.mxu0 0.0
    %v247 = vand.u32 %v81, 4294901760
    %248 = vmatmul.mubr.f32.gmra.mrb[0].mxu0 %v247
    %v249 = vpop.f32.mrb[0].mxu0
    %v250 = vadd.f32 %v159, %v249
    %v251 = vpop.f32.mrb[0].mxu0
    %252 = vdwg.mxu0
    %253 = vmatprep.subr.mxu0 0.0
    %v254 = vand.u32 %v68, 4294901760
    %v255 = vsub.f32 %v68, %v254
    %256 = vmatpush1.msra.mxu0 %v255
    %257 = vmatprep.subr.mxu0 0.0
    %v258 = vand.u32 %v69, 4294901760
    %v259 = vsub.f32 %v69, %v258
    %260 = vmatpush1.msra.mxu0 %v259
    %261 = vmatprep.subr.mxu0 0.0
    %v262 = vand.u32 %v70, 4294901760
    %v263 = vsub.f32 %v70, %v262
    %264 = vmatpush1.msra.mxu0 %v263
    %265 = vmatprep.subr.mxu0 0.0
    %v266 = vand.u32 %v71, 4294901760
    %v267 = vsub.f32 %v71, %v266
    %268 = vmatpush1.msra.mxu0 %v267
    %269 = vmatprep.subr.mxu0 0.0
    %270 = vmatpush1.msra.mxu0 0.0
    %271 = vmatprep.subr.mxu0 0.0
    %272 = vmatpush1.msra.mxu0 0.0
    %273 = vmatprep.subr.mxu0 0.0
    %274 = vmatpush1.msra.mxu0 0.0
    %275 = vmatprep.subr.mxu0 0.0
    %276 = vmatpush1.msra.mxu0 0.0
    %277 = vmatprep.subr.mxu0 0.0
    %278 = vmatpush1.msra.mxu0 0.0
    %279 = vmatprep.subr.mxu0 0.0
    %280 = vmatpush1.msra.mxu0 0.0
    %281 = vmatprep.subr.mxu0 0.0
    %282 = vmatpush1.msra.mxu0 0.0
    %283 = vmatprep.subr.mxu0 0.0
    %284 = vmatpush1.msra.mxu0 0.0
    %285 = vmatprep.subr.mxu0 0.0
    %286 = vmatpush1.msra.mxu0 0.0
    %287 = vmatprep.subr.mxu0 0.0
    %288 = vmatpush1.msra.mxu0 0.0
    %289 = vmatprep.subr.mxu0 0.0
    %290 = vmatpush1.msra.mxu0 0.0
    %291 = vmatprep.subr.mxu0 0.0
    %292 = vmatpush1.msra.mxu0 0.0
    %293 = vmatprep.subr.mxu0 0.0
    %294 = vmatpush1.msra.mxu0 0.0
    %295 = vmatprep.subr.mxu0 0.0
    %296 = vmatpush1.msra.mxu0 0.0
    %297 = vmatprep.subr.mxu0 0.0
    %298 = vmatpush1.msra.mxu0 0.0
    %299 = vmatprep.subr.mxu0 0.0
    %300 = vmatpush1.msra.mxu0 0.0
    %301 = vmatprep.subr.mxu0 0.0
    %302 = vmatpush1.msra.mxu0 0.0
    %303 = vmatprep.subr.mxu0 0.0
    %304 = vmatpush1.msra.mxu0 0.0
    %305 = vmatprep.subr.mxu0 0.0
    %306 = vmatpush1.msra.mxu0 0.0
    %307 = vmatprep.subr.mxu0 0.0
    %308 = vmatpush1.msra.mxu0 0.0
    %309 = vmatprep.subr.mxu0 0.0
    %310 = vmatpush1.msra.mxu0 0.0
    %311 = vmatprep.subr.mxu0 0.0
    %312 = vmatpush1.msra.mxu0 0.0
    %313 = vmatprep.subr.mxu0 0.0
    %314 = vmatpush1.msra.mxu0 0.0
    %315 = vmatprep.subr.mxu0 0.0
    %316 = vmatpush1.msra.mxu0 0.0
    %317 = vmatprep.subr.mxu0 0.0
    %318 = vmatpush1.msra.mxu0 0.0
    %319 = vmatprep.subr.mxu0 0.0
    %320 = vmatpush1.msra.mxu0 0.0
    %321 = vmatprep.subr.mxu0 0.0
    %322 = vmatpush1.msra.mxu0 0.0
    %323 = vmatprep.subr.mxu0 0.0
    %324 = vmatpush1.msra.mxu0 0.0
    %325 = vmatprep.mubr.f32.mxu0 0.0
    %v326 = vand.u32 %v81, 4294901760
    %v327 = vsub.f32 %v81, %v326
    %328 = vmatmul.mubr.f32.gmra.mrb[0].mxu0 %v327
    %v329 = vpop.f32.mrb[0].mxu0
    %v330 = vadd.f32 %v250, %v329
    %v331 = vpop.f32.mrb[0].mxu0
    %332 = vdwg.mxu0
    %333 = vmatprep.subr.mxu0 0.0
    %v334 = vand.u32 %v68, 4294901760
    %335 = vmatpush1.msra.mxu0 %v334
    %336 = vmatprep.subr.mxu0 0.0
    %v337 = vand.u32 %v69, 4294901760
    %338 = vmatpush1.msra.mxu0 %v337
    %339 = vmatprep.subr.mxu0 0.0
    %v340 = vand.u32 %v70, 4294901760
    %341 = vmatpush1.msra.mxu0 %v340
    %342 = vmatprep.subr.mxu0 0.0
    %v343 = vand.u32 %v71, 4294901760
    %344 = vmatpush1.msra.mxu0 %v343
    %345 = vmatprep.subr.mxu0 0.0
    %346 = vmatpush1.msra.mxu0 0.0
    %347 = vmatprep.subr.mxu0 0.0
    %348 = vmatpush1.msra.mxu0 0.0
    %349 = vmatprep.subr.mxu0 0.0
    %350 = vmatpush1.msra.mxu0 0.0
    %351 = vmatprep.subr.mxu0 0.0
    %352 = vmatpush1.msra.mxu0 0.0
    %353 = vmatprep.subr.mxu0 0.0
    %354 = vmatpush1.msra.mxu0 0.0
    %355 = vmatprep.subr.mxu0 0.0
    %356 = vmatpush1.msra.mxu0 0.0
    %357 = vmatprep.subr.mxu0 0.0
    %358 = vmatpush1.msra.mxu0 0.0
    %359 = vmatprep.subr.mxu0 0.0
    %360 = vmatpush1.msra.mxu0 0.0
    %361 = vmatprep.subr.mxu0 0.0
    %362 = vmatpush1.msra.mxu0 0.0
    %363 = vmatprep.subr.mxu0 0.0
    %364 = vmatpush1.msra.mxu0 0.0
    %365 = vmatprep.subr.mxu0 0.0
    %366 = vmatpush1.msra.mxu0 0.0
    %367 = vmatprep.subr.mxu0 0.0
    %368 = vmatpush1.msra.mxu0 0.0
    %369 = vmatprep.subr.mxu0 0.0
    %370 = vmatpush1.msra.mxu0 0.0
    %371 = vmatprep.subr.mxu0 0.0
    %372 = vmatpush1.msra.mxu0 0.0
    %373 = vmatprep.subr.mxu0 0.0
    %374 = vmatpush1.msra.mxu0 0.0
    %375 = vmatprep.subr.mxu0 0.0
    %376 = vmatpush1.msra.mxu0 0.0
    %377 = vmatprep.subr.mxu0 0.0
    %378 = vmatpush1.msra.mxu0 0.0
    %379 = vmatprep.subr.mxu0 0.0
    %380 = vmatpush1.msra.mxu0 0.0
    %381 = vmatprep.subr.mxu0 0.0
    %382 = vmatpush1.msra.mxu0 0.0
    %383 = vmatprep.subr.mxu0 0.0
    %384 = vmatpush1.msra.mxu0 0.0
    %385 = vmatprep.subr.mxu0 0.0
    %386 = vmatpush1.msra.mxu0 0.0
    %387 = vmatprep.subr.mxu0 0.0
    %388 = vmatpush1.msra.mxu0 0.0
    %389 = vmatprep.subr.mxu0 0.0
    %390 = vmatpush1.msra.mxu0 0.0
    %391 = vmatprep.subr.mxu0 0.0
    %392 = vmatpush1.msra.mxu0 0.0
    %393 = vmatprep.subr.mxu0 0.0
    %394 = vmatpush1.msra.mxu0 0.0
    %395 = vmatprep.subr.mxu0 0.0
    %396 = vmatpush1.msra.mxu0 0.0
    %397 = vmatprep.subr.mxu0 0.0
    %398 = vmatpush1.msra.mxu0 0.0
    %399 = vmatprep.subr.mxu0 0.0
    %400 = vmatpush1.msra.mxu0 0.0
    %401 = vmatprep.mubr.f32.mxu0 0.0
    %v402 = vand.u32 %v81, 4294901760
    %v403 = vsub.f32 %v81, %v402
    %v404 = vand.u32 %v403, 4294901760
    %405 = vmatmul.mubr.f32.gmra.mrb[0].mxu0 %v404
    %v406 = vpop.f32.mrb[0].mxu0
    %v407 = vadd.f32 %v330, %v406
    %v408 = vpop.f32.mrb[0].mxu0
    %409 = vdwg.mxu0
    %410 = vmatprep.subr.mxu0 0.0
    %v411 = vand.u32 %v68, 4294901760
    %v412 = vsub.f32 %v68, %v411
    %v413 = vand.u32 %v412, 4294901760
    %414 = vmatpush1.msra.mxu0 %v413
    %415 = vmatprep.subr.mxu0 0.0
    %v416 = vand.u32 %v69, 4294901760
    %v417 = vsub.f32 %v69, %v416
    %v418 = vand.u32 %v417, 4294901760
    %419 = vmatpush1.msra.mxu0 %v418
    %420 = vmatprep.subr.mxu0 0.0
    %v421 = vand.u32 %v70, 4294901760
    %v422 = vsub.f32 %v70, %v421
    %v423 = vand.u32 %v422, 4294901760
    %424 = vmatpush1.msra.mxu0 %v423
    %425 = vmatprep.subr.mxu0 0.0
    %v426 = vand.u32 %v71, 4294901760
    %v427 = vsub.f32 %v71, %v426
    %v428 = vand.u32 %v427, 4294901760
    %429 = vmatpush1.msra.mxu0 %v428
    %430 = vmatprep.subr.mxu0 0.0
    %431 = vmatpush1.msra.mxu0 0.0
    %432 = vmatprep.subr.mxu0 0.0
    %433 = vmatpush1.msra.mxu0 0.0
    %434 = vmatprep.subr.mxu0 0.0
    %435 = vmatpush1.msra.mxu0 0.0
    %436 = vmatprep.subr.mxu0 0.0
    %437 = vmatpush1.msra.mxu0 0.0
    %438 = vmatprep.subr.mxu0 0.0
    %439 = vmatpush1.msra.mxu0 0.0
    %440 = vmatprep.subr.mxu0 0.0
    %441 = vmatpush1.msra.mxu0 0.0
    %442 = vmatprep.subr.mxu0 0.0
    %443 = vmatpush1.msra.mxu0 0.0
    %444 = vmatprep.subr.mxu0 0.0
    %445 = vmatpush1.msra.mxu0 0.0
    %446 = vmatprep.subr.mxu0 0.0
    %447 = vmatpush1.msra.mxu0 0.0
    %448 = vmatprep.subr.mxu0 0.0
    %449 = vmatpush1.msra.mxu0 0.0
    %450 = vmatprep.subr.mxu0 0.0
    %451 = vmatpush1.msra.mxu0 0.0
    %452 = vmatprep.subr.mxu0 0.0
    %453 = vmatpush1.msra.mxu0 0.0
    %454 = vmatprep.subr.mxu0 0.0
    %455 = vmatpush1.msra.mxu0 0.0
    %456 = vmatprep.subr.mxu0 0.0
    %457 = vmatpush1.msra.mxu0 0.0
    %458 = vmatprep.subr.mxu0 0.0
    %459 = vmatpush1.msra.mxu0 0.0
    %460 = vmatprep.subr.mxu0 0.0
    %461 = vmatpush1.msra.mxu0 0.0
    %462 = vmatprep.subr.mxu0 0.0
    %463 = vmatpush1.msra.mxu0 0.0
    %464 = vmatprep.subr.mxu0 0.0
    %465 = vmatpush1.msra.mxu0 0.0
    %466 = vmatprep.subr.mxu0 0.0
    %467 = vmatpush1.msra.mxu0 0.0
    %468 = vmatprep.subr.mxu0 0.0
    %469 = vmatpush1.msra.mxu0 0.0
    %470 = vmatprep.subr.mxu0 0.0
    %471 = vmatpush1.msra.mxu0 0.0
    %472 = vmatprep.subr.mxu0 0.0
    %473 = vmatpush1.msra.mxu0 0.0
    %474 = vmatprep.subr.mxu0 0.0
    %475 = vmatpush1.msra.mxu0 0.0
    %476 = vmatprep.subr.mxu0 0.0
    %477 = vmatpush1.msra.mxu0 0.0
    %478 = vmatprep.subr.mxu0 0.0
    %479 = vmatpush1.msra.mxu0 0.0
    %480 = vmatprep.subr.mxu0 0.0
    %481 = vmatpush1.msra.mxu0 0.0
    %482 = vmatprep.subr.mxu0 0.0
    %483 = vmatpush1.msra.mxu0 0.0
    %484 = vmatprep.subr.mxu0 0.0
    %485 = vmatpush1.msra.mxu0 0.0
    %486 = vmatprep.mubr.f32.mxu0 0.0
    %v487 = vand.u32 %v81, 4294901760
    %488 = vmatmul.mubr.f32.gmra.mrb[0].mxu0 %v487
    %v489 = vpop.f32.mrb[0].mxu0
    %v490 = vadd.f32 %v407, %v489
    %v491 = vpop.f32.mrb[0].mxu0
    %492 = vdwg.mxu0
    %493 = vmatprep.subr.mxu0 0.0
    %v494 = vand.u32 %v68, 4294901760
    %495 = vmatpush1.msra.mxu0 %v494
    %496 = vmatprep.subr.mxu0 0.0
    %v497 = vand.u32 %v69, 4294901760
    %498 = vmatpush1.msra.mxu0 %v497
    %499 = vmatprep.subr.mxu0 0.0
    %v500 = vand.u32 %v70, 4294901760
    %501 = vmatpush1.msra.mxu0 %v500
    %502 = vmatprep.subr.mxu0 0.0
    %v503 = vand.u32 %v71, 4294901760
    %504 = vmatpush1.msra.mxu0 %v503
    %505 = vmatprep.subr.mxu0 0.0
    %506 = vmatpush1.msra.mxu0 0.0
    %507 = vmatprep.subr.mxu0 0.0
    %508 = vmatpush1.msra.mxu0 0.0
    %509 = vmatprep.subr.mxu0 0.0
    %510 = vmatpush1.msra.mxu0 0.0
    %511 = vmatprep.subr.mxu0 0.0
    %512 = vmatpush1.msra.mxu0 0.0
    %513 = vmatprep.subr.mxu0 0.0
    %514 = vmatpush1.msra.mxu0 0.0
    %515 = vmatprep.subr.mxu0 0.0
    %516 = vmatpush1.msra.mxu0 0.0
    %517 = vmatprep.subr.mxu0 0.0
    %518 = vmatpush1.msra.mxu0 0.0
    %519 = vmatprep.subr.mxu0 0.0
    %520 = vmatpush1.msra.mxu0 0.0
    %521 = vmatprep.subr.mxu0 0.0
    %522 = vmatpush1.msra.mxu0 0.0
    %523 = vmatprep.subr.mxu0 0.0
    %524 = vmatpush1.msra.mxu0 0.0
    %525 = vmatprep.subr.mxu0 0.0
    %526 = vmatpush1.msra.mxu0 0.0
    %527 = vmatprep.subr.mxu0 0.0
    %528 = vmatpush1.msra.mxu0 0.0
    %529 = vmatprep.subr.mxu0 0.0
    %530 = vmatpush1.msra.mxu0 0.0
    %531 = vmatprep.subr.mxu0 0.0
    %532 = vmatpush1.msra.mxu0 0.0
    %533 = vmatprep.subr.mxu0 0.0
    %534 = vmatpush1.msra.mxu0 0.0
    %535 = vmatprep.subr.mxu0 0.0
    %536 = vmatpush1.msra.mxu0 0.0
    %537 = vmatprep.subr.mxu0 0.0
    %538 = vmatpush1.msra.mxu0 0.0
    %539 = vmatprep.subr.mxu0 0.0
    %540 = vmatpush1.msra.mxu0 0.0
    %541 = vmatprep.subr.mxu0 0.0
    %542 = vmatpush1.msra.mxu0 0.0
    %543 = vmatprep.subr.mxu0 0.0
    %544 = vmatpush1.msra.mxu0 0.0
    %545 = vmatprep.subr.mxu0 0.0
    %546 = vmatpush1.msra.mxu0 0.0
    %547 = vmatprep.subr.mxu0 0.0
    %548 = vmatpush1.msra.mxu0 0.0
    %549 = vmatprep.subr.mxu0 0.0
    %550 = vmatpush1.msra.mxu0 0.0
    %551 = vmatprep.subr.mxu0 0.0
    %552 = vmatpush1.msra.mxu0 0.0
    %553 = vmatprep.subr.mxu0 0.0
    %554 = vmatpush1.msra.mxu0 0.0
    %555 = vmatprep.subr.mxu0 0.0
    %556 = vmatpush1.msra.mxu0 0.0
    %557 = vmatprep.subr.mxu0 0.0
    %558 = vmatpush1.msra.mxu0 0.0
    %559 = vmatprep.subr.mxu0 0.0
    %560 = vmatpush1.msra.mxu0 0.0
    %561 = vmatprep.mubr.f32.mxu0 0.0
    %v562 = vand.u32 %v81, 4294901760
    %563 = vmatmul.mubr.f32.gmra.mrb[0].mxu0 %v562
    %v564 = vpop.f32.mrb[0].mxu0
    %v565 = vadd.f32 %v490, %v564
    %v566 = vpop.f32.mrb[0].mxu0
    %567 = vdwg.mxu0
    %v568 = vmax.f32 %v565, 0.0
    %v569 = vld [vmem:[#allocation7] sm:$0xff]
    %v570 = vld [vmem:[#allocation7 + $0x8] sm:$0xff]
    %v571 = vld [vmem:[#allocation7 + $0x10] sm:$0xff]
    %v572 = vld [vmem:[#allocation7 + $0x18] sm:$0xff]
    %v573 = vld [vmem:[#allocation7 + $0x20] sm:$0xff]
    %v574 = vld [vmem:[#allocation7 + $0x28] sm:$0xff]
    %v575 = vld [vmem:[#allocation7 + $0x30] sm:$0xff]
    %v576 = vld [vmem:[#allocation7 + $0x38] sm:$0xff]
    %v577 = vld [vmem:[%s4] sm:$0x1]
    %v579 = vlaneseq
    %v580 = vshrl.u32 %v579, 7
    %v581 = vsub.s32 0, %v580
    %v582 = vrot.slane %v577, %v581
    %vm584 = vcmask 523264
    %v586 = vsel %vm584, %v568, 0
    %588 = vmatprep.subr.mxu0 0.0
    %v589 = vand.u32 %v569, 4294901760
    %590 = vmatpush1.msra.mxu0 %v589
    %591 = vmatprep.subr.mxu0 0.0
    %v592 = vand.u32 %v570, 4294901760
    %593 = vmatpush1.msra.mxu0 %v592
    %594 = vmatprep.subr.mxu0 0.0
    %v595 = vand.u32 %v571, 4294901760
    %596 = vmatpush1.msra.mxu0 %v595
    %597 = vmatprep.subr.mxu0 0.0
    %v598 = vand.u32 %v572, 4294901760
    %599 = vmatpush1.msra.mxu0 %v598
    %600 = vmatprep.subr.mxu0 0.0
    %v601 = vand.u32 %v573, 4294901760
    %602 = vmatpush1.msra.mxu0 %v601
    %603 = vmatprep.subr.mxu0 0.0
    %v604 = vand.u32 %v574, 4294901760
    %605 = vmatpush1.msra.mxu0 %v604
    %606 = vmatprep.subr.mxu0 0.0
    %v607 = vand.u32 %v575, 4294901760
    %608 = vmatpush1.msra.mxu0 %v607
    %609 = vmatprep.subr.mxu0 0.0
    %v610 = vand.u32 %v576, 4294901760
    %611 = vmatpush1.msra.mxu0 %v610
    %612 = vmatprep.subr.mxu0 0.0
    %613 = vmatpush1.msra.mxu0 0.0
    %614 = vmatprep.subr.mxu0 0.0
    %615 = vmatpush1.msra.mxu0 0.0
    %616 = vmatprep.subr.mxu0 0.0
    %617 = vmatpush1.msra.mxu0 0.0
    %618 = vmatprep.subr.mxu0 0.0
    %619 = vmatpush1.msra.mxu0 0.0
    %620 = vmatprep.subr.mxu0 0.0
    %621 = vmatpush1.msra.mxu0 0.0
    %622 = vmatprep.subr.mxu0 0.0
    %623 = vmatpush1.msra.mxu0 0.0
    %624 = vmatprep.subr.mxu0 0.0
    %625 = vmatpush1.msra.mxu0 0.0
    %626 = vmatprep.subr.mxu0 0.0
    %627 = vmatpush1.msra.mxu0 0.0
    %628 = vmatprep.subr.mxu0 0.0
    %629 = vmatpush1.msra.mxu0 0.0
    %630 = vmatprep.subr.mxu0 0.0
    %631 = vmatpush1.msra.mxu0 0.0
    %632 = vmatprep.subr.mxu0 0.0
    %633 = vmatpush1.msra.mxu0 0.0
    %634 = vmatprep.subr.mxu0 0.0
    %635 = vmatpush1.msra.mxu0 0.0
    %636 = vmatprep.subr.mxu0 0.0
    %637 = vmatpush1.msra.mxu0 0.0
    %638 = vmatprep.subr.mxu0 0.0
    %639 = vmatpush1.msra.mxu0 0.0
    %640 = vmatprep.subr.mxu0 0.0
    %641 = vmatpush1.msra.mxu0 0.0
    %642 = vmatprep.subr.mxu0 0.0
    %643 = vmatpush1.msra.mxu0 0.0
    %644 = vmatprep.subr.mxu0 0.0
    %645 = vmatpush1.msra.mxu0 0.0
    %646 = vmatprep.subr.mxu0 0.0
    %647 = vmatpush1.msra.mxu0 0.0
    %648 = vmatprep.subr.mxu0 0.0
    %649 = vmatpush1.msra.mxu0 0.0
    %650 = vmatprep.subr.mxu0 0.0
    %651 = vmatpush1.msra.mxu0 0.0
    %652 = vmatprep.subr.mxu0 0.0
    %653 = vmatpush1.msra.mxu0 0.0
    %654 = vmatprep.subr.mxu0 0.0
    %655 = vmatpush1.msra.mxu0 0.0
    %656 = vmatprep.subr.mxu0 0.0
    %657 = vmatpush1.msra.mxu0 0.0
    %658 = vmatprep.subr.mxu0 0.0
    %659 = vmatpush1.msra.mxu0 0.0
    %660 = vmatprep.mubr.f32.mxu0 0.0
    %v661 = vand.u32 %v586, 4294901760
    %v662 = vsub.f32 %v586, %v661
    %v663 = vand.u32 %v662, 4294901760
    %v664 = vsub.f32 %v662, %v663
    %v665 = vand.u32 %v664, 4294901760
    %666 = vmatmul.mubr.f32.gmra.mrb[0].mxu0 %v665
    %v667 = vpop.f32.mrb[0].mxu0
    %v668 = vadd.f32 %v582, %v667
    %v669 = vpop.f32.mrb[0].mxu0
    %670 = vdwg.mxu0
    %671 = vmatprep.subr.mxu0 0.0
    %v672 = vand.u32 %v569, 4294901760
    %v673 = vsub.f32 %v569, %v672
    %v674 = vand.u32 %v673, 4294901760
    %v675 = vsub.f32 %v673, %v674
    %v676 = vand.u32 %v675, 4294901760
    %677 = vmatpush1.msra.mxu0 %v676
    %678 = vmatprep.subr.mxu0 0.0
    %v679 = vand.u32 %v570, 4294901760
    %v680 = vsub.f32 %v570, %v679
    %v681 = vand.u32 %v680, 4294901760
    %v682 = vsub.f32 %v680, %v681
    %v683 = vand.u32 %v682, 4294901760
    %684 = vmatpush1.msra.mxu0 %v683
    %685 = vmatprep.subr.mxu0 0.0
    %v686 = vand.u32 %v571, 4294901760
    %v687 = vsub.f32 %v571, %v686
    %v688 = vand.u32 %v687, 4294901760
    %v689 = vsub.f32 %v687, %v688
    %v690 = vand.u32 %v689, 4294901760
    %691 = vmatpush1.msra.mxu0 %v690
    %692 = vmatprep.subr.mxu0 0.0
    %v693 = vand.u32 %v572, 4294901760
    %v694 = vsub.f32 %v572, %v693
    %v695 = vand.u32 %v694, 4294901760
    %v696 = vsub.f32 %v694, %v695
    %v697 = vand.u32 %v696, 4294901760
    %698 = vmatpush1.msra.mxu0 %v697
    %699 = vmatprep.subr.mxu0 0.0
    %v700 = vand.u32 %v573, 4294901760
    %v701 = vsub.f32 %v573, %v700
    %v702 = vand.u32 %v701, 4294901760
    %v703 = vsub.f32 %v701, %v702
    %v704 = vand.u32 %v703, 4294901760
    %705 = vmatpush1.msra.mxu0 %v704
    %706 = vmatprep.subr.mxu0 0.0
    %v707 = vand.u32 %v574, 4294901760
    %v708 = vsub.f32 %v574, %v707
    %v709 = vand.u32 %v708, 4294901760
    %v710 = vsub.f32 %v708, %v709
    %v711 = vand.u32 %v710, 4294901760
    %712 = vmatpush1.msra.mxu0 %v711
    %713 = vmatprep.subr.mxu0 0.0
    %v714 = vand.u32 %v575, 4294901760
    %v715 = vsub.f32 %v575, %v714
    %v716 = vand.u32 %v715, 4294901760
    %v717 = vsub.f32 %v715, %v716
    %v718 = vand.u32 %v717, 4294901760
    %719 = vmatpush1.msra.mxu0 %v718
    %720 = vmatprep.subr.mxu0 0.0
    %v721 = vand.u32 %v576, 4294901760
    %v722 = vsub.f32 %v576, %v721
    %v723 = vand.u32 %v722, 4294901760
    %v724 = vsub.f32 %v722, %v723
    %v725 = vand.u32 %v724, 4294901760
    %726 = vmatpush1.msra.mxu0 %v725
    %727 = vmatprep.subr.mxu0 0.0
    %728 = vmatpush1.msra.mxu0 0.0
    %729 = vmatprep.subr.mxu0 0.0
    %730 = vmatpush1.msra.mxu0 0.0
    %731 = vmatprep.subr.mxu0 0.0
    %732 = vmatpush1.msra.mxu0 0.0
    %733 = vmatprep.subr.mxu0 0.0
    %734 = vmatpush1.msra.mxu0 0.0
    %735 = vmatprep.subr.mxu0 0.0
    %736 = vmatpush1.msra.mxu0 0.0
    %737 = vmatprep.subr.mxu0 0.0
    %738 = vmatpush1.msra.mxu0 0.0
    %739 = vmatprep.subr.mxu0 0.0
    %740 = vmatpush1.msra.mxu0 0.0
    %741 = vmatprep.subr.mxu0 0.0
    %742 = vmatpush1.msra.mxu0 0.0
    %743 = vmatprep.subr.mxu0 0.0
    %744 = vmatpush1.msra.mxu0 0.0
    %745 = vmatprep.subr.mxu0 0.0
    %746 = vmatpush1.msra.mxu0 0.0
    %747 = vmatprep.subr.mxu0 0.0
    %748 = vmatpush1.msra.mxu0 0.0
    %749 = vmatprep.subr.mxu0 0.0
    %750 = vmatpush1.msra.mxu0 0.0
    %751 = vmatprep.subr.mxu0 0.0
    %752 = vmatpush1.msra.mxu0 0.0
    %753 = vmatprep.subr.mxu0 0.0
    %754 = vmatpush1.msra.mxu0 0.0
    %755 = vmatprep.subr.mxu0 0.0
    %756 = vmatpush1.msra.mxu0 0.0
    %757 = vmatprep.subr.mxu0 0.0
    %758 = vmatpush1.msra.mxu0 0.0
    %759 = vmatprep.subr.mxu0 0.0
    %760 = vmatpush1.msra.mxu0 0.0
    %761 = vmatprep.subr.mxu0 0.0
    %762 = vmatpush1.msra.mxu0 0.0
    %763 = vmatprep.subr.mxu0 0.0
    %764 = vmatpush1.msra.mxu0 0.0
    %765 = vmatprep.subr.mxu0 0.0
    %766 = vmatpush1.msra.mxu0 0.0
    %767 = vmatprep.subr.mxu0 0.0
    %768 = vmatpush1.msra.mxu0 0.0
    %769 = vmatprep.subr.mxu0 0.0
    %770 = vmatpush1.msra.mxu0 0.0
    %771 = vmatprep.subr.mxu0 0.0
    %772 = vmatpush1.msra.mxu0 0.0
    %773 = vmatprep.subr.mxu0 0.0
    %774 = vmatpush1.msra.mxu0 0.0
    %775 = vmatprep.mubr.f32.mxu0 0.0
    %v776 = vand.u32 %v586, 4294901760
    %777 = vmatmul.mubr.f32.gmra.mrb[0].mxu0 %v776
    %v778 = vpop.f32.mrb[0].mxu0
    %v779 = vadd.f32 %v668, %v778
    %v780 = vpop.f32.mrb[0].mxu0
    %781 = vdwg.mxu0
    %782 = vmatprep.subr.mxu0 0.0
    %v783 = vand.u32 %v569, 4294901760
    %v784 = vsub.f32 %v569, %v783
    %785 = vmatpush1.msra.mxu0 %v784
    %786 = vmatprep.subr.mxu0 0.0
    %v787 = vand.u32 %v570, 4294901760
    %v788 = vsub.f32 %v570, %v787
    %789 = vmatpush1.msra.mxu0 %v788
    %790 = vmatprep.subr.mxu0 0.0
    %v791 = vand.u32 %v571, 4294901760
    %v792 = vsub.f32 %v571, %v791
    %793 = vmatpush1.msra.mxu0 %v792
    %794 = vmatprep.subr.mxu0 0.0
    %v795 = vand.u32 %v572, 4294901760
    %v796 = vsub.f32 %v572, %v795
    %797 = vmatpush1.msra.mxu0 %v796
    %798 = vmatprep.subr.mxu0 0.0
    %v799 = vand.u32 %v573, 4294901760
    %v800 = vsub.f32 %v573, %v799
    %801 = vmatpush1.msra.mxu0 %v800
    %802 = vmatprep.subr.mxu0 0.0
    %v803 = vand.u32 %v574, 4294901760
    %v804 = vsub.f32 %v574, %v803
    %805 = vmatpush1.msra.mxu0 %v804
    %806 = vmatprep.subr.mxu0 0.0
    %v807 = vand.u32 %v575, 4294901760
    %v808 = vsub.f32 %v575, %v807
    %809 = vmatpush1.msra.mxu0 %v808
    %810 = vmatprep.subr.mxu0 0.0
    %v811 = vand.u32 %v576, 4294901760
    %v812 = vsub.f32 %v576, %v811
    %813 = vmatpush1.msra.mxu0 %v812
    %814 = vmatprep.subr.mxu0 0.0
    %815 = vmatpush1.msra.mxu0 0.0
    %816 = vmatprep.subr.mxu0 0.0
    %817 = vmatpush1.msra.mxu0 0.0
    %818 = vmatprep.subr.mxu0 0.0
    %819 = vmatpush1.msra.mxu0 0.0
    %820 = vmatprep.subr.mxu0 0.0
    %821 = vmatpush1.msra.mxu0 0.0
    %822 = vmatprep.subr.mxu0 0.0
    %823 = vmatpush1.msra.mxu0 0.0
    %824 = vmatprep.subr.mxu0 0.0
    %825 = vmatpush1.msra.mxu0 0.0
    %826 = vmatprep.subr.mxu0 0.0
    %827 = vmatpush1.msra.mxu0 0.0
    %828 = vmatprep.subr.mxu0 0.0
    %829 = vmatpush1.msra.mxu0 0.0
    %830 = vmatprep.subr.mxu0 0.0
    %831 = vmatpush1.msra.mxu0 0.0
    %832 = vmatprep.subr.mxu0 0.0
    %833 = vmatpush1.msra.mxu0 0.0
    %834 = vmatprep.subr.mxu0 0.0
    %835 = vmatpush1.msra.mxu0 0.0
    %836 = vmatprep.subr.mxu0 0.0
    %837 = vmatpush1.msra.mxu0 0.0
    %838 = vmatprep.subr.mxu0 0.0
    %839 = vmatpush1.msra.mxu0 0.0
    %840 = vmatprep.subr.mxu0 0.0
    %841 = vmatpush1.msra.mxu0 0.0
    %842 = vmatprep.subr.mxu0 0.0
    %843 = vmatpush1.msra.mxu0 0.0
    %844 = vmatprep.subr.mxu0 0.0
    %845 = vmatpush1.msra.mxu0 0.0
    %846 = vmatprep.subr.mxu0 0.0
    %847 = vmatpush1.msra.mxu0 0.0
    %848 = vmatprep.subr.mxu0 0.0
    %849 = vmatpush1.msra.mxu0 0.0
    %850 = vmatprep.subr.mxu0 0.0
    %851 = vmatpush1.msra.mxu0 0.0
    %852 = vmatprep.subr.mxu0 0.0
    %853 = vmatpush1.msra.mxu0 0.0
    %854 = vmatprep.subr.mxu0 0.0
    %855 = vmatpush1.msra.mxu0 0.0
    %856 = vmatprep.subr.mxu0 0.0
    %857 = vmatpush1.msra.mxu0 0.0
    %858 = vmatprep.subr.mxu0 0.0
    %859 = vmatpush1.msra.mxu0 0.0
    %860 = vmatprep.subr.mxu0 0.0
    %861 = vmatpush1.msra.mxu0 0.0
    %862 = vmatprep.mubr.f32.mxu0 0.0
    %v863 = vand.u32 %v586, 4294901760
    %v864 = vsub.f32 %v586, %v863
    %865 = vmatmul.mubr.f32.gmra.mrb[0].mxu0 %v864
    %v866 = vpop.f32.mrb[0].mxu0
    %v867 = vadd.f32 %v779, %v866
    %v868 = vpop.f32.mrb[0].mxu0
    %869 = vdwg.mxu0
    %870 = vmatprep.subr.mxu0 0.0
    %v871 = vand.u32 %v569, 4294901760
    %872 = vmatpush1.msra.mxu0 %v871
    %873 = vmatprep.subr.mxu0 0.0
    %v874 = vand.u32 %v570, 4294901760
    %875 = vmatpush1.msra.mxu0 %v874
    %876 = vmatprep.subr.mxu0 0.0
    %v877 = vand.u32 %v571, 4294901760
    %878 = vmatpush1.msra.mxu0 %v877
    %879 = vmatprep.subr.mxu0 0.0
    %v880 = vand.u32 %v572, 4294901760
    %881 = vmatpush1.msra.mxu0 %v880
    %882 = vmatprep.subr.mxu0 0.0
    %v883 = vand.u32 %v573, 4294901760
    %884 = vmatpush1.msra.mxu0 %v883
    %885 = vmatprep.subr.mxu0 0.0
    %v886 = vand.u32 %v574, 4294901760
    %887 = vmatpush1.msra.mxu0 %v886
    %888 = vmatprep.subr.mxu0 0.0
    %v889 = vand.u32 %v575, 4294901760
    %890 = vmatpush1.msra.mxu0 %v889
    %891 = vmatprep.subr.mxu0 0.0
    %v892 = vand.u32 %v576, 4294901760
    %893 = vmatpush1.msra.mxu0 %v892
    %894 = vmatprep.subr.mxu0 0.0
    %895 = vmatpush1.msra.mxu0 0.0
    %896 = vmatprep.subr.mxu0 0.0
    %897 = vmatpush1.msra.mxu0 0.0
    %898 = vmatprep.subr.mxu0 0.0
    %899 = vmatpush1.msra.mxu0 0.0
    %900 = vmatprep.subr.mxu0 0.0
    %901 = vmatpush1.msra.mxu0 0.0
    %902 = vmatprep.subr.mxu0 0.0
    %903 = vmatpush1.msra.mxu0 0.0
    %904 = vmatprep.subr.mxu0 0.0
    %905 = vmatpush1.msra.mxu0 0.0
    %906 = vmatprep.subr.mxu0 0.0
    %907 = vmatpush1.msra.mxu0 0.0
    %908 = vmatprep.subr.mxu0 0.0
    %909 = vmatpush1.msra.mxu0 0.0
    %910 = vmatprep.subr.mxu0 0.0
    %911 = vmatpush1.msra.mxu0 0.0
    %912 = vmatprep.subr.mxu0 0.0
    %913 = vmatpush1.msra.mxu0 0.0
    %914 = vmatprep.subr.mxu0 0.0
    %915 = vmatpush1.msra.mxu0 0.0
    %916 = vmatprep.subr.mxu0 0.0
    %917 = vmatpush1.msra.mxu0 0.0
    %918 = vmatprep.subr.mxu0 0.0
    %919 = vmatpush1.msra.mxu0 0.0
    %920 = vmatprep.subr.mxu0 0.0
    %921 = vmatpush1.msra.mxu0 0.0
    %922 = vmatprep.subr.mxu0 0.0
    %923 = vmatpush1.msra.mxu0 0.0
    %924 = vmatprep.subr.mxu0 0.0
    %925 = vmatpush1.msra.mxu0 0.0
    %926 = vmatprep.subr.mxu0 0.0
    %927 = vmatpush1.msra.mxu0 0.0
    %928 = vmatprep.subr.mxu0 0.0
    %929 = vmatpush1.msra.mxu0 0.0
    %930 = vmatprep.subr.mxu0 0.0
    %931 = vmatpush1.msra.mxu0 0.0
    %932 = vmatprep.subr.mxu0 0.0
    %933 = vmatpush1.msra.mxu0 0.0
    %934 = vmatprep.subr.mxu0 0.0
    %935 = vmatpush1.msra.mxu0 0.0
    %936 = vmatprep.subr.mxu0 0.0
    %937 = vmatpush1.msra.mxu0 0.0
    %938 = vmatprep.subr.mxu0 0.0
    %939 = vmatpush1.msra.mxu0 0.0
    %940 = vmatprep.subr.mxu0 0.0
    %941 = vmatpush1.msra.mxu0 0.0
    %942 = vmatprep.mubr.f32.mxu0 0.0
    %v943 = vand.u32 %v586, 4294901760
    %v944 = vsub.f32 %v586, %v943
    %v945 = vand.u32 %v944, 4294901760
    %946 = vmatmul.mubr.f32.gmra.mrb[0].mxu0 %v945
    %v947 = vpop.f32.mrb[0].mxu0
    %v948 = vadd.f32 %v867, %v947
    %v949 = vpop.f32.mrb[0].mxu0
    %950 = vdwg.mxu0
    %951 = vmatprep.subr.mxu0 0.0
    %v952 = vand.u32 %v569, 4294901760
    %v953 = vsub.f32 %v569, %v952
    %v954 = vand.u32 %v953, 4294901760
    %955 = vmatpush1.msra.mxu0 %v954
    %956 = vmatprep.subr.mxu0 0.0
    %v957 = vand.u32 %v570, 4294901760
    %v958 = vsub.f32 %v570, %v957
    %v959 = vand.u32 %v958, 4294901760
    %960 = vmatpush1.msra.mxu0 %v959
    %961 = vmatprep.subr.mxu0 0.0
    %v962 = vand.u32 %v571, 4294901760
    %v963 = vsub.f32 %v571, %v962
    %v964 = vand.u32 %v963, 4294901760
    %965 = vmatpush1.msra.mxu0 %v964
    %966 = vmatprep.subr.mxu0 0.0
    %v967 = vand.u32 %v572, 4294901760
    %v968 = vsub.f32 %v572, %v967
    %v969 = vand.u32 %v968, 4294901760
    %970 = vmatpush1.msra.mxu0 %v969
    %971 = vmatprep.subr.mxu0 0.0
    %v972 = vand.u32 %v573, 4294901760
    %v973 = vsub.f32 %v573, %v972
    %v974 = vand.u32 %v973, 4294901760
    %975 = vmatpush1.msra.mxu0 %v974
    %976 = vmatprep.subr.mxu0 0.0
    %v977 = vand.u32 %v574, 4294901760
    %v978 = vsub.f32 %v574, %v977
    %v979 = vand.u32 %v978, 4294901760
    %980 = vmatpush1.msra.mxu0 %v979
    %981 = vmatprep.subr.mxu0 0.0
    %v982 = vand.u32 %v575, 4294901760
    %v983 = vsub.f32 %v575, %v982
    %v984 = vand.u32 %v983, 4294901760
    %985 = vmatpush1.msra.mxu0 %v984
    %986 = vmatprep.subr.mxu0 0.0
    %v987 = vand.u32 %v576, 4294901760
    %v988 = vsub.f32 %v576, %v987
    %v989 = vand.u32 %v988, 4294901760
    %990 = vmatpush1.msra.mxu0 %v989
    %991 = vmatprep.subr.mxu0 0.0
    %992 = vmatpush1.msra.mxu0 0.0
    %993 = vmatprep.subr.mxu0 0.0
    %994 = vmatpush1.msra.mxu0 0.0
    %995 = vmatprep.subr.mxu0 0.0
    %996 = vmatpush1.msra.mxu0 0.0
    %997 = vmatprep.subr.mxu0 0.0
    %998 = vmatpush1.msra.mxu0 0.0
    %999 = vmatprep.subr.mxu0 0.0
    %1000 = vmatpush1.msra.mxu0 0.0
    %1001 = vmatprep.subr.mxu0 0.0
    %1002 = vmatpush1.msra.mxu0 0.0
    %1003 = vmatprep.subr.mxu0 0.0
    %1004 = vmatpush1.msra.mxu0 0.0
    %1005 = vmatprep.subr.mxu0 0.0
    %1006 = vmatpush1.msra.mxu0 0.0
    %1007 = vmatprep.subr.mxu0 0.0
    %1008 = vmatpush1.msra.mxu0 0.0
    %1009 = vmatprep.subr.mxu0 0.0
    %1010 = vmatpush1.msra.mxu0 0.0
    %1011 = vmatprep.subr.mxu0 0.0
    %1012 = vmatpush1.msra.mxu0 0.0
    %1013 = vmatprep.subr.mxu0 0.0
    %1014 = vmatpush1.msra.mxu0 0.0
    %1015 = vmatprep.subr.mxu0 0.0
    %1016 = vmatpush1.msra.mxu0 0.0
    %1017 = vmatprep.subr.mxu0 0.0
    %1018 = vmatpush1.msra.mxu0 0.0
    %1019 = vmatprep.subr.mxu0 0.0
    %1020 = vmatpush1.msra.mxu0 0.0
    %1021 = vmatprep.subr.mxu0 0.0
    %1022 = vmatpush1.msra.mxu0 0.0
    %1023 = vmatprep.subr.mxu0 0.0
    %1024 = vmatpush1.msra.mxu0 0.0
    %1025 = vmatprep.subr.mxu0 0.0
    %1026 = vmatpush1.msra.mxu0 0.0
    %1027 = vmatprep.subr.mxu0 0.0
    %1028 = vmatpush1.msra.mxu0 0.0
    %1029 = vmatprep.subr.mxu0 0.0
    %1030 = vmatpush1.msra.mxu0 0.0
    %1031 = vmatprep.subr.mxu0 0.0
    %1032 = vmatpush1.msra.mxu0 0.0
    %1033 = vmatprep.subr.mxu0 0.0
    %1034 = vmatpush1.msra.mxu0 0.0
    %1035 = vmatprep.subr.mxu0 0.0
    %1036 = vmatpush1.msra.mxu0 0.0
    %1037 = vmatprep.subr.mxu0 0.0
    %1038 = vmatpush1.msra.mxu0 0.0
    %1039 = vmatprep.mubr.f32.mxu0 0.0
    %v1040 = vand.u32 %v586, 4294901760
    %1041 = vmatmul.mubr.f32.gmra.mrb[0].mxu0 %v1040
    %v1042 = vpop.f32.mrb[0].mxu0
    %v1043 = vadd.f32 %v948, %v1042
    %v1044 = vpop.f32.mrb[0].mxu0
    %1045 = vdwg.mxu0
    %1046 = vmatprep.subr.mxu0 0.0
    %v1047 = vand.u32 %v569, 4294901760
    %1048 = vmatpush1.msra.mxu0 %v1047
    %1049 = vmatprep.subr.mxu0 0.0
    %v1050 = vand.u32 %v570, 4294901760
    %1051 = vmatpush1.msra.mxu0 %v1050
    %1052 = vmatprep.subr.mxu0 0.0
    %v1053 = vand.u32 %v571, 4294901760
    %1054 = vmatpush1.msra.mxu0 %v1053
    %1055 = vmatprep.subr.mxu0 0.0
    %v1056 = vand.u32 %v572, 4294901760
    %1057 = vmatpush1.msra.mxu0 %v1056
    %1058 = vmatprep.subr.mxu0 0.0
    %v1059 = vand.u32 %v573, 4294901760
    %1060 = vmatpush1.msra.mxu0 %v1059
    %1061 = vmatprep.subr.mxu0 0.0
    %v1062 = vand.u32 %v574, 4294901760
    %1063 = vmatpush1.msra.mxu0 %v1062
    %1064 = vmatprep.subr.mxu0 0.0
    %v1065 = vand.u32 %v575, 4294901760
    %1066 = vmatpush1.msra.mxu0 %v1065
    %1067 = vmatprep.subr.mxu0 0.0
    %v1068 = vand.u32 %v576, 4294901760
    %1069 = vmatpush1.msra.mxu0 %v1068
    %1070 = vmatprep.subr.mxu0 0.0
    %1071 = vmatpush1.msra.mxu0 0.0
    %1072 = vmatprep.subr.mxu0 0.0
    %1073 = vmatpush1.msra.mxu0 0.0
    %1074 = vmatprep.subr.mxu0 0.0
    %1075 = vmatpush1.msra.mxu0 0.0
    %1076 = vmatprep.subr.mxu0 0.0
    %1077 = vmatpush1.msra.mxu0 0.0
    %1078 = vmatprep.subr.mxu0 0.0
    %1079 = vmatpush1.msra.mxu0 0.0
    %1080 = vmatprep.subr.mxu0 0.0
    %1081 = vmatpush1.msra.mxu0 0.0
    %1082 = vmatprep.subr.mxu0 0.0
    %1083 = vmatpush1.msra.mxu0 0.0
    %1084 = vmatprep.subr.mxu0 0.0
    %1085 = vmatpush1.msra.mxu0 0.0
    %1086 = vmatprep.subr.mxu0 0.0
    %1087 = vmatpush1.msra.mxu0 0.0
    %1088 = vmatprep.subr.mxu0 0.0
    %1089 = vmatpush1.msra.mxu0 0.0
    %1090 = vmatprep.subr.mxu0 0.0
    %1091 = vmatpush1.msra.mxu0 0.0
    %1092 = vmatprep.subr.mxu0 0.0
    %1093 = vmatpush1.msra.mxu0 0.0
    %1094 = vmatprep.subr.mxu0 0.0
    %1095 = vmatpush1.msra.mxu0 0.0
    %1096 = vmatprep.subr.mxu0 0.0
    %1097 = vmatpush1.msra.mxu0 0.0
    %1098 = vmatprep.subr.mxu0 0.0
    %1099 = vmatpush1.msra.mxu0 0.0
    %1100 = vmatprep.subr.mxu0 0.0
    %1101 = vmatpush1.msra.mxu0 0.0
    %1102 = vmatprep.subr.mxu0 0.0
    %1103 = vmatpush1.msra.mxu0 0.0
    %1104 = vmatprep.subr.mxu0 0.0
    %1105 = vmatpush1.msra.mxu0 0.0
    %1106 = vmatprep.subr.mxu0 0.0
    %1107 = vmatpush1.msra.mxu0 0.0
    %1108 = vmatprep.subr.mxu0 0.0
    %1109 = vmatpush1.msra.mxu0 0.0
    %1110 = vmatprep.subr.mxu0 0.0
    %1111 = vmatpush1.msra.mxu0 0.0
    %1112 = vmatprep.subr.mxu0 0.0
    %1113 = vmatpush1.msra.mxu0 0.0
    %1114 = vmatprep.subr.mxu0 0.0
    %1115 = vmatpush1.msra.mxu0 0.0
    %1116 = vmatprep.subr.mxu0 0.0
    %1117 = vmatpush1.msra.mxu0 0.0
    %1118 = vmatprep.mubr.f32.mxu0 0.0
    %v1119 = vand.u32 %v586, 4294901760
    %1120 = vmatmul.mubr.f32.gmra.mrb[0].mxu0 %v1119
    %v1121 = vpop.f32.mrb[0].mxu0
    %v1122 = vadd.f32 %v1043, %v1121
    %v1123 = vpop.f32.mrb[0].mxu0
    %1124 = vdwg.mxu0
    %v1125 = vmax.f32 %v1122, 0.0
    %v1126 = vld [vmem:[%s5] sm:$0x1]
    %v1128 = vlaneseq
    %v1129 = vshrl.u32 %v1128, 7
    %v1130 = vsub.s32 0, %v1129
    %v1131 = vrot.slane %v1126, %v1130
    %v1133 = vmul.f32 %v1125, %v1131
    %v1134 = vsel %vm584, %v1133, 0.0
    %1135 = vadd.xlane.f32.xlu0 %v1134
    %v1136 = vpop.xlane.xlu0 %1135
    %v1137 = vld [vmem:[#allocation2] sm:$0x1]
    %v1139 = vlaneseq
    %v1140 = vshrl.u32 %v1139, 7
    %v1141 = vsub.s32 0, %v1140
    %v1142 = vrot.slane %v1137, %v1141
    %v1144 = vadd.f32 %v1136, %v1142
    %vm1145 = vcmask 7168
    %1146 = vst.msk [vmem:[%s7] sm:$0xff] %vm1145, %v1144
    // Predicated region
    $region42: #{tpu_custom_call.1} parent=1 // pred_check
      _
    $region43: #{tpu_custom_call.1} parent=1 // pred_check_branch
      %1148 = sbr.rel (0) target = $region45
    $region44: #{tpu_custom_call.1} parent=1 // pred_region
      _
    $region45: #{tpu_custom_call.1} parent=1 // pred_fallthru
      _
    // Predicated region
    $region46: #{tpu_custom_call.1} parent=1 // pred_check
      _
    $region47: #{tpu_custom_call.1} parent=1 // pred_check_branch
      %1150 = sbr.rel (0) target = $region49
    $region48: #{tpu_custom_call.1} parent=1 // pred_region
      _
    $region49: #{tpu_custom_call.1} parent=1 // pred_fallthru
      _
    %1151 = vsyncpa [#allocation4], 1
    %1152 = vsyncpa [#allocation6], 1

</llo_original>
